<compile_context>
chip_gen: v7x
topology: tpu7x:2x2x1
jax: 0.10.0
libtpu: 0.0.40
codegen_flags: <defaults>
</compile_context>

<pallas_src>
import functools

import jax
import jax.numpy as jnp
from jax.experimental import pallas as pl
from jax.experimental.pallas import tpu as pltpu  # noqa: F401  (TPU backend)


def _linear_add_kernel(x_ref, wb_ref, o_ref, *, K):
    # x_ref: (M, K); wb_ref: (K+1, N) with rows [0:K] = w.T, row [K] = bias+other.
    acc = jnp.dot(x_ref[...], wb_ref[:K, :], preferred_element_type=jnp.float32)
    o_ref[...] = (acc + wb_ref[K:, :]).astype(o_ref.dtype)


def pack_constants(w, b, other):
    """One-time parameter prep: w is PyTorch-layout (N, K), b/other are (N,).

    Returns a single (K+1, N) f32 block: rows 0..K-1 = w.T, row K = b + other.
    """
    return jnp.concatenate([w.T, (b + other)[None, :]], axis=0)


def linear_add(x, wb_packed):
    """Computes x @ w.T + (bias + other) from the packed constant block."""
    M, K = x.shape
    Kp1, N = wb_packed.shape
    assert Kp1 == K + 1

    kernel = functools.partial(_linear_add_kernel, K=K)

    # Tiny problem: one full-array block per operand, no grid, single MXU push.
    return pl.pallas_call(
        kernel,
        out_shape=jax.ShapeDtypeStruct((M, N), x.dtype),
        in_specs=[
            pl.BlockSpec((M, K), lambda: (0, 0)),        # x        (32, 7)
            pl.BlockSpec((K + 1, N), lambda: (0, 0)),    # packed   (8, 32)
        ],
        out_specs=pl.BlockSpec((M, N), lambda: (0, 0)),
    )(x, wb_packed)


if __name__ == "__main__":
    key = jax.random.PRNGKey(0)
    k_x, k_w, k_b, k_o = jax.random.split(key, 4)

    M, K, N = 32, 7, 32  # x1: (32, 7), Linear(7, 32), other: (32,)

    x1 = jax.random.normal(k_x, (M, K), dtype=jnp.float32)
    # Deterministic "parameters" for nn.Linear(7, 32): weight (32, 7), bias (32,)
    bound = 1.0 / (K ** 0.5)
    w = jax.random.uniform(k_w, (N, K), dtype=jnp.float32, minval=-bound, maxval=bound)
    b = jax.random.uniform(k_b, (N,), dtype=jnp.float32, minval=-bound, maxval=bound)
    other = jax.random.uniform(k_o, (N,), dtype=jnp.float32)  # torch.rand(32)

    # One-time constant packing (module-setup time, not per-call).
    wb_packed = pack_constants(w, b, other)
    wb_packed = jax.block_until_ready(wb_packed)

    out = linear_add(x1, wb_packed)
    out = jax.block_until_ready(out)

    # Reference check in plain JAX.
    ref = x1 @ w.T + b + other
    assert out.shape == (M, N)
    assert jnp.allclose(out, ref, atol=1e-5, rtol=1e-5)

    print("KERNEL_OK")
</pallas_src>

<mosaic_0001>
module attributes {stable_mosaic.version = 11 : i64} {
  func.func @_linear_add_kernel(%arg0: memref<32x7xf32, #tpu.memory_space<vmem>>, %arg1: memref<8x32xf32, #tpu.memory_space<vmem>>, %arg2: memref<32x32xf32, #tpu.memory_space<vmem>>) attributes {dimension_semantics = [], scalar_prefetch = 0 : i64, scratch_operands = 0 : i64, tpu.core_type = #tpu.core_type<tc>} {
    %c0 = arith.constant 0 : index
    %c0_0 = arith.constant 0 : index
    %0 = vector.load %arg0[%c0, %c0_0] : memref<32x7xf32, #tpu.memory_space<vmem>>, vector<32x7xf32>
    %c0_1 = arith.constant 0 : index
    %c0_2 = arith.constant 0 : index
    %1 = vector.load %arg1[%c0_1, %c0_2] : memref<8x32xf32, #tpu.memory_space<vmem>>, vector<7x32xf32>
    %cst = arith.constant dense<0.000000e+00> : vector<32x32xf32>
    %2 = tpu.matmul %0, %1, %cst {dimension_numbers = #tpu.dot_dimension_numbers<[1], [0], [0], [1], [0, 0, 1, 1], [], []>} : vector<32x7xf32>, vector<7x32xf32>, vector<32x32xf32> -> vector<32x32xf32>
    %c7 = arith.constant 7 : index
    %c0_3 = arith.constant 0 : index
    %3 = vector.load %arg1[%c7, %c0_3] : memref<8x32xf32, #tpu.memory_space<vmem>>, vector<1x32xf32>
    %4 = vector.broadcast %3 : vector<1x32xf32> to vector<32x32xf32>
    %5 = arith.addf %2, %4 : vector<32x32xf32>
    %c0_4 = arith.constant 0 : index
    %c0_5 = arith.constant 0 : index
    %6 = vector.load %arg2[%c0_4, %c0_5] : memref<32x32xf32, #tpu.memory_space<vmem>>, vector<32x32xf32>
    tpu.vector_store %arg2[%c0_4, %c0_5], %5 {strides = array<i32>} : memref<32x32xf32, #tpu.memory_space<vmem>>, vector<32x32xf32>,
    return
  }
}

</mosaic_0001>

<llo_original>
// kernel: tpu_custom_call.1
$region0: #{tpu_custom_call.1}
  #allocation0 [shape = 'u32[]', space=smem, size = 0x4, offset = 0x4, fixed_abs, tag = 'smem constant byte address 0x4 - core index']
  #allocation1 [shape = 'u32[144,128]{1,0:T(1,128)}', space=vmem, size = 0x12000, scoped, tag = 'internal scratch']
  %s0 = inlined_call_operand.vmem [shape: f32[32,7], index: 0, kind: input, shape index: {}]
  %s1 = inlined_call_operand.vmem [shape: f32[8,32], index: 1, kind: input, shape index: {}]
  %s2 = inlined_call_operand.hbm [shape: f32[32,32], index: 2, kind: output, shape index: {}]
  %s3 = sld [smem:[#allocation0]]
  $region18: #{tpu_custom_call.1} parent=0
    _
  %s5 = ssub.s32 1, %s3
  %s6 = scalar_select 0, %s5, %s3
  $region1: #{tpu_custom_call.1} parent=0
    #allocation2 [shape = 'u8[16384]{0}', space=vmem, size = 0x4000, scoped, tag = 'output window, operand 0, single buffered']
    #allocation3 [shape = 's32[1]{0}', space=sflag, size = 0x4, scoped, tag = 'scoped memory for tpu_custom_call.1']
    %7 = vsyncpa [#allocation3], 0
    // Predicated region
    $region2: #{tpu_custom_call.1} parent=1 // pred_check
      _
    $region3: #{tpu_custom_call.1} parent=1 // pred_check_branch
      %9 = sbr.rel (0) target = $region5
    $region4: #{tpu_custom_call.1} parent=1 // pred_region
      _
    $region5: #{tpu_custom_call.1} parent=1 // pred_fallthru
      _
    // Predicated region
    $region6: #{tpu_custom_call.1} parent=1 // pred_check
      _
    $region7: #{tpu_custom_call.1} parent=1 // pred_check_branch
      %11 = sbr.rel (0) target = $region9
    $region8: #{tpu_custom_call.1} parent=1 // pred_region
      _
    $region9: #{tpu_custom_call.1} parent=1 // pred_fallthru
      _
    %v12 = vld [vmem:[%s0] sm:$0xff]
    %v13 = vld [vmem:[%s0 + $0x8] sm:$0xff]
    %v14 = vld [vmem:[%s0 + $0x10] sm:$0xff]
    %v15 = vld [vmem:[%s0 + $0x18] sm:$0xff]
    %v16 = vld [vmem:[%s1] sm:$0x7f]
    %v17 = vld [vmem:[%s1 + $0x7] sm:$0x1]
    %v18 = vlaneseq
    %v19 = vshrl.u32 %v18, 7
    %v20 = vsub.s32 0, %v19
    %v21 = vrot.slane %v17, %v20
    %vm22 = vcmask 56320
    %v24 = vsel %vm22, %v12, 0
    %v27 = vsel %vm22, %v13, 0
    %v30 = vsel %vm22, %v14, 0
    %v33 = vsel %vm22, %v15, 0
    %vm35 = vcmask 1046528
    %v37 = vsel %vm35, %v16, 0
    %39 = vmatprep.subr.mxu0 0.0
    %40 = vmatpush1.msra.mxu0 %v37
    %41 = vmatprep.subr.mxu0 0.0
    %42 = vmatpush1.msra.mxu0 0.0
    %43 = vmatprep.subr.mxu0 0.0
    %44 = vmatpush1.msra.mxu0 0.0
    %45 = vmatprep.subr.mxu0 0.0
    %46 = vmatpush1.msra.mxu0 0.0
    %47 = vmatprep.subr.mxu0 0.0
    %48 = vmatpush1.msra.mxu0 0.0
    %49 = vmatprep.subr.mxu0 0.0
    %50 = vmatpush1.msra.mxu0 0.0
    %51 = vmatprep.subr.mxu0 0.0
    %52 = vmatpush1.msra.mxu0 0.0
    %53 = vmatprep.subr.mxu0 0.0
    %54 = vmatpush1.msra.mxu0 0.0
    %55 = vmatprep.subr.mxu0 0.0
    %56 = vmatpush1.msra.mxu0 0.0
    %57 = vmatprep.subr.mxu0 0.0
    %58 = vmatpush1.msra.mxu0 0.0
    %59 = vmatprep.subr.mxu0 0.0
    %60 = vmatpush1.msra.mxu0 0.0
    %61 = vmatprep.subr.mxu0 0.0
    %62 = vmatpush1.msra.mxu0 0.0
    %63 = vmatprep.subr.mxu0 0.0
    %64 = vmatpush1.msra.mxu0 0.0
    %65 = vmatprep.subr.mxu0 0.0
    %66 = vmatpush1.msra.mxu0 0.0
    %67 = vmatprep.subr.mxu0 0.0
    %68 = vmatpush1.msra.mxu0 0.0
    %69 = vmatprep.subr.mxu0 0.0
    %70 = vmatpush1.msra.mxu0 0.0
    %71 = vmatprep.subr.mxu0 0.0
    %72 = vmatpush1.msra.mxu0 0.0
    %73 = vmatprep.subr.mxu0 0.0
    %74 = vmatpush1.msra.mxu0 0.0
    %75 = vmatprep.subr.mxu0 0.0
    %76 = vmatpush1.msra.mxu0 0.0
    %77 = vmatprep.subr.mxu0 0.0
    %78 = vmatpush1.msra.mxu0 0.0
    %79 = vmatprep.subr.mxu0 0.0
    %80 = vmatpush1.msra.mxu0 0.0
    %81 = vmatprep.subr.mxu0 0.0
    %82 = vmatpush1.msra.mxu0 0.0
    %83 = vmatprep.subr.mxu0 0.0
    %84 = vmatpush1.msra.mxu0 0.0
    %85 = vmatprep.subr.mxu0 0.0
    %86 = vmatpush1.msra.mxu0 0.0
    %87 = vmatprep.subr.mxu0 0.0
    %88 = vmatpush1.msra.mxu0 0.0
    %89 = vmatprep.subr.mxu0 0.0
    %90 = vmatpush1.msra.mxu0 0.0
    %91 = vmatprep.subr.mxu0 0.0
    %92 = vmatpush1.msra.mxu0 0.0
    %93 = vmatprep.subr.mxu0 0.0
    %94 = vmatpush1.msra.mxu0 0.0
    %95 = vmatprep.subr.mxu0 0.0
    %96 = vmatpush1.msra.mxu0 0.0
    %97 = vmatprep.subr.mxu0 0.0
    %98 = vmatpush1.msra.mxu0 0.0
    %99 = vmatprep.subr.mxu0 0.0
    %100 = vmatpush1.msra.mxu0 0.0
    %101 = vmatprep.subr.mxu0 0.0
    %102 = vmatpush1.msra.mxu0 0.0
    %103 = vmatprep.mubr.f32.mxu0 0.0
    %104 = vmatmul.mubr.f32.gmra.mrb[0].mxu0 %v24
    %v105 = vpop.f32.mrb[0].mxu0
    %v106 = vadd.f32 %v21, %v105
    %v107 = vpop.f32.mrb[0].mxu0
    %108 = vmatprep.mubr.f32.mxu0 0.0
    %109 = vmatmul.mubr.f32.gmra.mrb[0].mxu0 %v27
    %v110 = vpop.f32.mrb[0].mxu0
    %v111 = vadd.f32 %v21, %v110
    %v112 = vpop.f32.mrb[0].mxu0
    %113 = vmatprep.mubr.f32.mxu0 0.0
    %114 = vmatmul.mubr.f32.gmra.mrb[0].mxu0 %v30
    %v115 = vpop.f32.mrb[0].mxu0
    %v116 = vadd.f32 %v21, %v115
    %v117 = vpop.f32.mrb[0].mxu0
    %118 = vmatprep.mubr.f32.mxu0 0.0
    %119 = vmatmul.mubr.f32.gmra.mrb[0].mxu0 %v33
    %v120 = vpop.f32.mrb[0].mxu0
    %v121 = vadd.f32 %v21, %v120
    %v122 = vpop.f32.mrb[0].mxu0
    %123 = vdwg.mxu0
    %vm124 = vcmask 261120
    %125 = vst.msk [vmem:[#allocation2] sm:$0xff] %vm124, %v106
    %126 = vst.msk [vmem:[#allocation2 + $0x8] sm:$0xff] %vm124, %v111
    %127 = vst.msk [vmem:[#allocation2 + $0x10] sm:$0xff] %vm124, %v116
    %128 = vst.msk [vmem:[#allocation2 + $0x18] sm:$0xff] %vm124, %v121
    // Predicated region
    $region10: #{tpu_custom_call.1} parent=1 // pred_check
      _
    $region11: #{tpu_custom_call.1} parent=1 // pred_check_branch
      %130 = sbr.rel (0) target = $region13
    $region12: #{tpu_custom_call.1} parent=1 // pred_region
      %s132 = ssub.s32 512, 512
      %133 = vsyncadd [#allocation3], %s132
      %s134 = sshll.u32 [#allocation2], 4
      %s135 = int_to_ptr.vmem [resolvable:$true] %s134
      %140 = dma.vmem_to_hbm [thread:$0]  %s135, 512, %s2, [#allocation3], 128, 128, 8
    $region13: #{tpu_custom_call.1} parent=1 // pred_fallthru
      _
    // Predicated region
    $region14: #{tpu_custom_call.1} parent=1 // pred_check
      _
    $region15: #{tpu_custom_call.1} parent=1 // pred_check_branch
      %142 = sbr.rel (0) target = $region17
    $region16: #{tpu_custom_call.1} parent=1 // pred_region
      %143 = dma.done [#allocation3], 512
    $region17: #{tpu_custom_call.1} parent=1 // pred_fallthru
      _
    %144 = vsyncpa [#allocation3], 1

</llo_original>
